<compile_context>
chip_gen: v7x
topology: tpu7x:2x2x1
jax: 0.10.0
libtpu: 0.0.40
codegen_flags: <defaults>
</compile_context>

<pallas_src>
import functools

import jax
import jax.numpy as jnp
from jax.experimental import pallas as pl
from jax.experimental.pallas import tpu as pltpu


def _predictor_kernel(tt_ref, wcat_ref, att_ref, out_ref, *, E, R, thr, no_norm):
    t = pl.program_id(0)

    # Seed the memory (carried in the resident output block) with one-hot tails.
    @pl.when(t == 0)
    def _():
        col_ids = jax.lax.broadcasted_iota(jnp.int32, out_ref.shape, 1)
        out_ref[...] = (col_ids == tt_ref[...]).astype(jnp.float32)

    mem = out_ref[...]                         # [M, E] f32, M = rank*B
    att = att_ref[0]                           # [M, R+1] f32

    # One fused MXU matmul for all operators:
    #   p[:, r*E:(r+1)*E] == mem @ mdb[r].T
    p = jnp.dot(mem.astype(jnp.bfloat16), wcat_ref[...],
                preferred_element_type=jnp.float32)        # [M, R*E] f32

    acc = mem * att[:, R:R + 1]                # identity ("self") split
    for r in range(R):                         # static unroll, lane-aligned slabs
        acc = acc + p[:, r * E:(r + 1) * E] * att[:, r:r + 1]

    if not no_norm:                            # torch F.normalize(p=1, eps=thr)
        denom = jnp.maximum(jnp.sum(jnp.abs(acc), axis=1, keepdims=True),
                            jnp.float32(thr))
        acc = acc / denom

    out_ref[...] = acc                         # carry memory into the next step


def predictor_forward(attention, tt, mdb, *, num_entity, rank, num_step,
                      num_operator, thr, no_norm=False):
    """JAX/Pallas equivalent of Predictor_GPU.forward.

    attention: [rank, num_step, B, num_operator+1] float32
    tt:        [B] int32 tail indices
    mdb:       [num_operator, E, E] float32 (0/1 adjacency matrices)
    returns:   [B, E] float32 prediction
    """
    B = tt.shape[0]
    E = num_entity
    R = num_operator
    n_prop = num_step - 1
    tt = tt.astype(jnp.int32)

    if n_prop <= 0:
        # No propagation steps: every rank contributes the raw one-hot tails.
        return jnp.float32(rank) * jax.nn.one_hot(tt, E, dtype=jnp.float32)

    if R == 0:
        # Degenerate case: only the identity split, no operator matmuls.
        mem = jnp.tile(jax.nn.one_hot(tt, E, dtype=jnp.float32)[None], (rank, 1, 1))
        for t in range(n_prop):
            res = mem * attention[:, t, :, -1:]
            if not no_norm:
                res = res / jnp.maximum(
                    jnp.sum(jnp.abs(res), axis=-1, keepdims=True), thr)
            mem = res
        return jnp.sum(mem, axis=0)

    M = rank * B

    # Concatenated, transposed operators: W_cat[k, r*E + j] = mdb[r, j, k].
    # Entries are 0/1, so the bf16 cast is lossless on the weights.
    w_cat = jnp.transpose(mdb, (2, 0, 1)).reshape(E, R * E).astype(jnp.bfloat16)

    # Fold rank into the M dimension (rank-major rows), pre-permute attention.
    att_all = jnp.transpose(attention[:, :n_prop].astype(jnp.float32),
                            (1, 0, 2, 3)).reshape(n_prop, M, R + 1)
    tt_col = jnp.tile(tt, (rank,)).reshape(M, 1)

    # Explicit VMEM budget: resident weights (x2 for the revolving buffer),
    # resident output/memory block, matmul result + attention blocks + margin.
    need = 2 * w_cat.size * 2 + M * (E + R * E + R + 1) * 4 + (4 << 20)
    vmem_limit = int(min(64 * (1 << 20), max(32 * (1 << 20), need)))

    kernel = functools.partial(_predictor_kernel, E=E, R=R, thr=float(thr),
                               no_norm=bool(no_norm))

    mem_final = pl.pallas_call(
        kernel,
        out_shape=jax.ShapeDtypeStruct((M, E), jnp.float32),
        grid_spec=pltpu.PrefetchScalarGridSpec(
            num_scalar_prefetch=0,
            grid=(n_prop,),
            in_specs=[
                pl.BlockSpec((M, 1), lambda t: (0, 0)),            # tail indices
                pl.BlockSpec((E, R * E), lambda t: (0, 0)),        # weights, DMA'd once
                pl.BlockSpec((1, M, R + 1), lambda t: (t, 0, 0)),  # per-step attention
            ],
            out_specs=pl.BlockSpec((M, E), lambda t: (0, 0)),      # resident memory carrier
        ),
        compiler_params=pltpu.CompilerParams(
            dimension_semantics=("arbitrary",),
            vmem_limit_bytes=vmem_limit),
    )(tt_col, w_cat, att_all)

    # Sum over rank outside the kernel (rows are rank-major: m = i*B + b).
    return jnp.sum(mem_final.reshape(rank, B, E), axis=0)


def predictor_reference(attention, tt, mdb, *, num_entity, rank, num_step,
                        num_operator, thr, no_norm=False):
    """Pure-JAX reference mirroring the torch loop structure."""
    tails = jax.nn.one_hot(tt, num_entity, dtype=jnp.float32)
    preds = []
    for i in range(rank):
        mem = tails
        for t in range(num_step):
            if t < num_step - 1:
                a = attention[i, t]                                  # [B, R+1]
                res = mem * a[:, -1:]
                for r in range(num_operator):
                    res = res + (mem @ mdb[r].T) * a[:, r:r + 1]
                if not no_norm:
                    res = res / jnp.maximum(
                        jnp.sum(jnp.abs(res), axis=1, keepdims=True), thr)
                mem = res
        preds.append(mem)
    return sum(preds)


if __name__ == "__main__":
    # Small option-like configuration consistent with the forward pass.
    num_entity = 128     # E
    num_operator = 4     # R
    rank = 2
    num_step = 3         # -> 2 propagation steps
    thr = 1e-6
    no_norm = False
    B = 8                # number of tail queries (len(tt))

    key = jax.random.PRNGKey(0)
    k1, k2, k3 = jax.random.split(key, 3)

    tt = jax.random.randint(k1, (B,), 0, num_entity, dtype=jnp.int32)
    # Sparse 0/1 relation adjacency matrices, like the torch mdb operator list.
    mdb = (jax.random.uniform(k2, (num_operator, num_entity, num_entity))
           < 0.05).astype(jnp.float32)
    # Positive attention weights over (num_operator + 1) splits per rank/step.
    attention = jax.nn.softmax(
        jax.random.normal(k3, (rank, num_step, B, num_operator + 1)), axis=-1
    ).astype(jnp.float32)

    pred = predictor_forward(attention, tt, mdb,
                             num_entity=num_entity, rank=rank,
                             num_step=num_step, num_operator=num_operator,
                             thr=thr, no_norm=no_norm)
    pred = jax.block_until_ready(pred)

    ref = predictor_reference(attention, tt, mdb,
                              num_entity=num_entity, rank=rank,
                              num_step=num_step, num_operator=num_operator,
                              thr=thr, no_norm=no_norm)

    assert pred.shape == (B, num_entity)
    # Weights are exact in bf16; only the propagated memory loses mantissa bits
    # in the bf16 matmul input, so compare with a bf16-appropriate tolerance.
    assert jnp.allclose(pred, ref, rtol=3e-2, atol=1e-3), (
        f"max abs err = {jnp.max(jnp.abs(pred - ref))}")
    print("KERNEL_OK")
</pallas_src>

<mosaic_0001>
module attributes {stable_mosaic.version = 11 : i64} {
  func.func @_predictor_kernel(%arg0: i32, %arg1: memref<16x1xi32, #tpu.memory_space<vmem>>, %arg2: memref<128x512xbf16, #tpu.memory_space<vmem>>, %arg3: memref<1x16x5xf32, #tpu.memory_space<vmem>>, %arg4: memref<16x128xf32, #tpu.memory_space<vmem>>) attributes {dimension_semantics = [#tpu.dimension_semantics<arbitrary>], iteration_bounds = array<i64: 2>, scalar_prefetch = 0 : i64, scratch_operands = 0 : i64, tpu.core_type = #tpu.core_type<tc>, window_params = [{pipeline_mode = #tpu.pipeline_mode<synchronous>, transform_indices = @transform_0, window_bounds = array<i64: 16, 1>}, {pipeline_mode = #tpu.pipeline_mode<synchronous>, transform_indices = @transform_1, window_bounds = array<i64: 128, 512>}, {transform_indices = @transform_2, window_bounds = array<i64: 1, 16, 5>}, {pipeline_mode = #tpu.pipeline_mode<synchronous>, transform_indices = @transform_3, window_bounds = array<i64: 16, 128>}]} {
    %c0_i32 = arith.constant 0 : i32
    %0 = arith.cmpi eq, %arg0, %c0_i32 : i32
    %1 = arith.extui %0 : i1 to i32
    %c0_i32_0 = arith.constant 0 : i32
    %2 = arith.cmpi ne, %1, %c0_i32_0 : i32
    scf.if %2 {
      %40 = tpu.iota {dimensions = array<i32: 1>} : vector<16x128xi32>
      %c0_11 = arith.constant 0 : index
      %c0_12 = arith.constant 0 : index
      %41 = vector.load %arg1[%c0_11, %c0_12] : memref<16x1xi32, #tpu.memory_space<vmem>>, vector<16x1xi32>
      %42 = vector.broadcast %41 : vector<16x1xi32> to vector<16x128xi32>
      %43 = arith.cmpi eq, %40, %42 : vector<16x128xi32>
      %44 = arith.extui %43 : vector<16x128xi1> to vector<16x128xi32>
      %45 = arith.sitofp %44 : vector<16x128xi32> to vector<16x128xf32>
      %c0_13 = arith.constant 0 : index
      %c0_14 = arith.constant 0 : index
      %46 = vector.load %arg4[%c0_13, %c0_14] : memref<16x128xf32, #tpu.memory_space<vmem>>, vector<16x128xf32>
      tpu.vector_store %arg4[%c0_13, %c0_14], %45 {strides = array<i32>} : memref<16x128xf32, #tpu.memory_space<vmem>>, vector<16x128xf32>,
    } else {
    }
    %c0 = arith.constant 0 : index
    %c0_1 = arith.constant 0 : index
    %3 = vector.load %arg4[%c0, %c0_1] : memref<16x128xf32, #tpu.memory_space<vmem>>, vector<16x128xf32>
    %c0_2 = arith.constant 0 : index
    %c0_3 = arith.constant 0 : index
    %c0_4 = arith.constant 0 : index
    %4 = vector.load %arg3[%c0_2, %c0_3, %c0_4] : memref<1x16x5xf32, #tpu.memory_space<vmem>>, vector<1x16x5xf32>
    %5 = vector.shape_cast %4 : vector<1x16x5xf32> to vector<16x5xf32>
    %6 = arith.truncf %3 : vector<16x128xf32> to vector<16x128xbf16>
    %c0_5 = arith.constant 0 : index
    %c0_6 = arith.constant 0 : index
    %7 = vector.load %arg2[%c0_5, %c0_6] : memref<128x512xbf16, #tpu.memory_space<vmem>>, vector<128x512xbf16>
    %cst = arith.constant dense<0.000000e+00> : vector<16x512xf32>
    %8 = tpu.matmul %6, %7, %cst {dimension_numbers = #tpu.dot_dimension_numbers<[1], [0], [0], [1], [0, 0, 1, 1], [], []>} : vector<16x128xbf16>, vector<128x512xbf16>, vector<16x512xf32> -> vector<16x512xf32>
    %9 = vector.extract_strided_slice %5 {offsets = [0, 4], sizes = [16, 1], strides = [1, 1]} : vector<16x5xf32> to vector<16x1xf32>
    %10 = vector.broadcast %9 : vector<16x1xf32> to vector<16x128xf32>
    %11 = arith.mulf %3, %10 : vector<16x128xf32>
    %12 = vector.extract_strided_slice %8 {offsets = [0, 0], sizes = [16, 128], strides = [1, 1]} : vector<16x512xf32> to vector<16x128xf32>
    %13 = vector.extract_strided_slice %5 {offsets = [0, 0], sizes = [16, 1], strides = [1, 1]} : vector<16x5xf32> to vector<16x1xf32>
    %14 = vector.broadcast %13 : vector<16x1xf32> to vector<16x128xf32>
    %15 = arith.mulf %12, %14 : vector<16x128xf32>
    %16 = arith.addf %11, %15 : vector<16x128xf32>
    %17 = vector.extract_strided_slice %8 {offsets = [0, 128], sizes = [16, 128], strides = [1, 1]} : vector<16x512xf32> to vector<16x128xf32>
    %18 = vector.extract_strided_slice %5 {offsets = [0, 1], sizes = [16, 1], strides = [1, 1]} : vector<16x5xf32> to vector<16x1xf32>
    %19 = vector.broadcast %18 : vector<16x1xf32> to vector<16x128xf32>
    %20 = arith.mulf %17, %19 : vector<16x128xf32>
    %21 = arith.addf %16, %20 : vector<16x128xf32>
    %22 = vector.extract_strided_slice %8 {offsets = [0, 256], sizes = [16, 128], strides = [1, 1]} : vector<16x512xf32> to vector<16x128xf32>
    %23 = vector.extract_strided_slice %5 {offsets = [0, 2], sizes = [16, 1], strides = [1, 1]} : vector<16x5xf32> to vector<16x1xf32>
    %24 = vector.broadcast %23 : vector<16x1xf32> to vector<16x128xf32>
    %25 = arith.mulf %22, %24 : vector<16x128xf32>
    %26 = arith.addf %21, %25 : vector<16x128xf32>
    %27 = vector.extract_strided_slice %8 {offsets = [0, 384], sizes = [16, 128], strides = [1, 1]} : vector<16x512xf32> to vector<16x128xf32>
    %28 = vector.extract_strided_slice %5 {offsets = [0, 3], sizes = [16, 1], strides = [1, 1]} : vector<16x5xf32> to vector<16x1xf32>
    %29 = vector.broadcast %28 : vector<16x1xf32> to vector<16x128xf32>
    %30 = arith.mulf %27, %29 : vector<16x128xf32>
    %31 = arith.addf %26, %30 : vector<16x128xf32>
    %32 = math.absf %31 : vector<16x128xf32>
    %cst_7 = arith.constant dense<0.000000e+00> : vector<16xf32>
    %33 = vector.multi_reduction <add>, %32, %cst_7 [1] : vector<16x128xf32> to vector<16xf32>
    %34 = vector.shape_cast %33 : vector<16xf32> to vector<16x1xf32>
    %cst_8 = arith.constant 9.99999997E-7 : f32
    %35 = vector.broadcast %cst_8 : f32 to vector<16x1xf32>
    %36 = arith.maximumf %34, %35 : vector<16x1xf32>
    %37 = vector.broadcast %36 : vector<16x1xf32> to vector<16x128xf32>
    %38 = arith.divf %31, %37 : vector<16x128xf32>
    %c0_9 = arith.constant 0 : index
    %c0_10 = arith.constant 0 : index
    %39 = vector.load %arg4[%c0_9, %c0_10] : memref<16x128xf32, #tpu.memory_space<vmem>>, vector<16x128xf32>
    tpu.vector_store %arg4[%c0_9, %c0_10], %38 {strides = array<i32>} : memref<16x128xf32, #tpu.memory_space<vmem>>, vector<16x128xf32>,
    return
  }
  func.func @transform_0(%arg0: i32) -> (i32, i32) {
    %c0_i32 = arith.constant 0 : i32
    %c0_i32_0 = arith.constant 0 : i32
    %c0_i32_1 = arith.constant 0 : i32
    return %c0_i32, %c0_i32_0 : i32, i32
  }
  func.func @transform_1(%arg0: i32) -> (i32, i32) {
    %c0_i32 = arith.constant 0 : i32
    %c0_i32_0 = arith.constant 0 : i32
    %c0_i32_1 = arith.constant 0 : i32
    return %c0_i32, %c0_i32_0 : i32, i32
  }
  func.func @transform_2(%arg0: i32) -> (i32, i32, i32) {
    %c0_i32 = arith.constant 0 : i32
    %c0_i32_0 = arith.constant 0 : i32
    %c0_i32_1 = arith.constant 0 : i32
    return %arg0, %c0_i32, %c0_i32_0 : i32, i32, i32
  }
  func.func @transform_3(%arg0: i32) -> (i32, i32) {
    %c0_i32 = arith.constant 0 : i32
    %c0_i32_0 = arith.constant 0 : i32
    %c0_i32_1 = arith.constant 0 : i32
    return %c0_i32, %c0_i32_0 : i32, i32
  }
}

</mosaic_0001>

<llo_original>
// kernel: tpu_custom_call.1
$region0: #{tpu_custom_call.1}
  #allocation0 [shape = 'u32[]', space=smem, size = 0x4, offset = 0x4, fixed_abs, tag = 'smem constant byte address 0x4 - core index']
  #allocation1 [shape = 'u32[144,128]{1,0:T(1,128)}', space=vmem, size = 0x12000, scoped, tag = 'internal scratch']
  %s0 = inlined_call_operand.vmem [shape: s32[16,1], index: 0, kind: input, shape index: {}]
  %s1 = inlined_call_operand.hbm [shape: bf16[128,512], index: 1, kind: input, shape index: {}]
  %s2 = inlined_call_operand.vmem [shape: f32[2,16,5], index: 2, kind: input, shape index: {}]
  %s3 = inlined_call_operand.hbm [shape: f32[16,128], index: 3, kind: output, shape index: {}]
  %s4 = sld [smem:[#allocation0]]
  $region53: #{tpu_custom_call.1} parent=0
    _
  %s6 = ssub.s32 1, %s4
  %s7 = scalar_select 0, %s6, %s4
  $region1: #{tpu_custom_call.1} parent=0
    #allocation2 [shape = 'u8[131072]{0}', space=vmem, size = 0x20000, scoped, tag = 'input window, operand 1, single buffered']
    #allocation3 [shape = 's32[2]{0}', space=sflag, size = 0x8, scoped, tag = 'scoped memory for tpu_custom_call.1']
    #allocation4 [shape = 's32[2]{0}', space=sflag, size = 0x8, scoped, tag = 'scoped memory for tpu_custom_call.1']
    #allocation5 [shape = 'u8[8192]{0}', space=vmem, size = 0x2000, scoped, tag = 'output window, operand 0, single buffered']
    %8 = vsyncpa [#allocation3], 0
    %9 = vsyncpa [#allocation4], 0
    loop: start=0, step=1, limit=4
    $region2: #{tpu_custom_call.1} parent=1 // loop_pre_header
      _
    $region3: #{tpu_custom_call.1} parent=1 // loop_header
      %s11 = sphi 0, %s15
      %p12 = scmp.ge.s32.totalorder %s11, 4
      %s19 = sphi 0, %s19
      %s21 = sphi 0, %s19
      %s22 = sphi 0, %s21
      %s36 = sphi 0, %s22
      %s40 = sphi 0, %s40
      %s42 = sphi 0, %s40
      %s43 = sphi 0, %s42
      %s57 = sphi 0, %s43
      %s63 = sphi 0, %s65
      %s66 = sphi 0, %s63
      %s67 = sphi 0, %s66
      %s83 = sphi 0, %s67
      %s87 = sphi 0, %s87
      %s89 = sphi 0, %s87
      %s90 = sphi 0, %s89
      %s104 = sphi 0, %s90
    $region4: #{tpu_custom_call.1} parent=1 // loop_header_branch
      %14 = sbr.rel (%p12) target = $region8
    $region5: #{tpu_custom_call.1} parent=1 // loop_body
      %s16 = ssub.s32 %s11, 1
      %s17 = ssub.s32 %s11, 2
      %s18 = sadd.s32 %s11, 1
      %s20 = sadd.s32 %s19, 1
      %p23 = scmp.eq.s32.totalorder %s11, 1
      %p24 = scmp.ne.s32.totalorder %s19, %s21
      %p25 = scmp.eq.s32.totalorder %s11, 0
      %p26 = por %p24, %p25
      %p27 = scmp.ne.s32.totalorder %s19, %s21
      %p28 = scmp.eq.s32.totalorder %s16, 1
      %p29 = por %p27, %p28
      %p30 = scmp.ne.s32.totalorder %s21, %s22
      %p31 = scmp.eq.s32.totalorder %s16, 0
      %p32 = por %p30, %p31
      %p33 = scmp.ne.s32.totalorder %s21, %s22
      %p34 = scmp.eq.s32.totalorder %s17, 1
      %p35 = por %p33, %p34
      %p37 = scmp.ne.s32.totalorder %s22, %s36
      %p38 = scmp.eq.s32.totalorder %s17, 0
      %p39 = por %p37, %p38
      %s41 = sadd.s32 %s40, 1
      %p44 = scmp.eq.s32.totalorder %s11, 1
      %p45 = scmp.ne.s32.totalorder %s40, %s42
      %p46 = scmp.eq.s32.totalorder %s11, 0
      %p47 = por %p45, %p46
      %p48 = scmp.ne.s32.totalorder %s40, %s42
      %p49 = scmp.eq.s32.totalorder %s16, 1
      %p50 = por %p48, %p49
      %p51 = scmp.ne.s32.totalorder %s42, %s43
      %p52 = scmp.eq.s32.totalorder %s16, 0
      %p53 = por %p51, %p52
      %p54 = scmp.ne.s32.totalorder %s42, %s43
      %p55 = scmp.eq.s32.totalorder %s17, 1
      %p56 = por %p54, %p55
      %p58 = scmp.ne.s32.totalorder %s43, %s57
      %p59 = scmp.eq.s32.totalorder %s17, 0
      %p60 = por %p58, %p59
      %s61 = ssub.s32 %s11, %s18
      %p62 = scmp.eq.s32.totalorder %s61, 0
      %s64 = sadd.s32 %s63, 1
      %s65 = scalar_select %p62, %s63, %s64
      %p68 = pneg %p62
      %p69 = scmp.eq.s32.totalorder %s11, 1
      %p70 = por %p68, %p69
      %p71 = scmp.ne.s32.totalorder %s63, %s66
      %p72 = scmp.eq.s32.totalorder %s11, 0
      %p73 = por %p71, %p72
      %p74 = scmp.ne.s32.totalorder %s63, %s66
      %p75 = scmp.eq.s32.totalorder %s16, 1
      %p76 = por %p74, %p75
      %p77 = scmp.ne.s32.totalorder %s66, %s67
      %p78 = scmp.eq.s32.totalorder %s16, 0
      %p79 = por %p77, %p78
      %p80 = scmp.ne.s32.totalorder %s66, %s67
      %p81 = scmp.eq.s32.totalorder %s17, 1
      %p82 = por %p80, %p81
      %p84 = scmp.ne.s32.totalorder %s67, %s83
      %p85 = scmp.eq.s32.totalorder %s17, 0
      %p86 = por %p84, %p85
      %s88 = sadd.s32 %s87, 1
      %p91 = scmp.eq.s32.totalorder %s11, 1
      %p92 = scmp.ne.s32.totalorder %s87, %s89
      %p93 = scmp.eq.s32.totalorder %s11, 0
      %p94 = por %p92, %p93
      %p95 = scmp.ne.s32.totalorder %s87, %s89
      %p96 = scmp.eq.s32.totalorder %s16, 1
      %p97 = por %p95, %p96
      %p98 = scmp.ne.s32.totalorder %s89, %s90
      %p99 = scmp.eq.s32.totalorder %s16, 0
      %p100 = por %p98, %p99
      %p101 = scmp.ne.s32.totalorder %s89, %s90
      %p102 = scmp.eq.s32.totalorder %s17, 1
      %p103 = por %p101, %p102
      %p105 = scmp.ne.s32.totalorder %s90, %s104
      %p106 = scmp.eq.s32.totalorder %s17, 0
      %p107 = por %p105, %p106
      %p108 = scmp.le.s32.totalorder 1, %s11
      %p109 = scmp.lt.s32.totalorder %s11, 3
      %p110 = pnand %p108, %p109
      %p111 = pneg %p110
      // Predicated region
      $region9: #{tpu_custom_call.1} parent=5 // pred_check
        _
      $region10: #{tpu_custom_call.1} parent=5 // pred_check_branch
        %113 = sbr.rel (%p110) target = $region12
      $region11: #{tpu_custom_call.1} parent=5 // pred_region
        %s114 = ssub.s32 %s11, 1
        // Predicated region
        $region13: #{tpu_custom_call.1} parent=11 // pred_check
          %p115 = pneg %p32
        $region14: #{tpu_custom_call.1} parent=11 // pred_check_branch
          %117 = sbr.rel (%p115) target = $region16
        $region15: #{tpu_custom_call.1} parent=11 // pred_region
          _
        $region16: #{tpu_custom_call.1} parent=11 // pred_fallthru
          _
        // Predicated region
        $region17: #{tpu_custom_call.1} parent=11 // pred_check
          %p118 = pneg %p53
        $region18: #{tpu_custom_call.1} parent=11 // pred_check_branch
          %120 = sbr.rel (%p118) target = $region20
        $region19: #{tpu_custom_call.1} parent=11 // pred_region
          %s122 = ssub.s32 4096, 4096
          %123 = vsyncadd [#allocation3], %s122
          %s124 = sshll.u32 [#allocation2], 4
          %s125 = int_to_ptr.vmem [resolvable:$true] %s124
          %130 = dma.hbm_to_vmem [thread:$0]  %s1, 4096, %s125, [#allocation3], 256, 256, 16
        $region20: #{tpu_custom_call.1} parent=11 // pred_fallthru
          _
      $region12: #{tpu_custom_call.1} parent=5 // pred_fallthru
        _
      %p131 = scmp.lt.s32.totalorder %s11, 2
      // Predicated region
      $region21: #{tpu_custom_call.1} parent=5 // pred_check
        %p132 = pneg %p131
      $region22: #{tpu_custom_call.1} parent=5 // pred_check_branch
        %134 = sbr.rel (%p132) target = $region24
      $region23: #{tpu_custom_call.1} parent=5 // pred_region
        // Predicated region
        $region25: #{tpu_custom_call.1} parent=23 // pred_check
          %p135 = pneg %p73
        $region26: #{tpu_custom_call.1} parent=23 // pred_check_branch
          %137 = sbr.rel (%p135) target = $region28
        $region27: #{tpu_custom_call.1} parent=23 // pred_region
          %p138 = scmp.lt.s32.totalorder %s11, 1
          %s139 = scalar_select %p138, %s11, 1
          %s140 = smul.addr %s139, 2
          %s141 = smul.addr %s140, 8
          %s142 = scalar_lea.vmem %s2, %s141
        $region28: #{tpu_custom_call.1} parent=23 // pred_fallthru
          _
      $region24: #{tpu_custom_call.1} parent=5 // pred_fallthru
        _
      %p143 = scmp.le.s32.totalorder 1, %s11
      %p144 = scmp.lt.s32.totalorder %s11, 3
      %p145 = pnand %p143, %p144
      %p146 = pneg %p145
      // Predicated region
      $region29: #{tpu_custom_call.1} parent=5 // pred_check
        _
      $region30: #{tpu_custom_call.1} parent=5 // pred_check_branch
        %148 = sbr.rel (%p145) target = $region32
      $region31: #{tpu_custom_call.1} parent=5 // pred_region
        %s149 = ssub.s32 %s11, 1
        // Predicated region
        $region33: #{tpu_custom_call.1} parent=31 // pred_check
          %p150 = pneg %p53
        $region34: #{tpu_custom_call.1} parent=31 // pred_check_branch
          %152 = sbr.rel (%p150) target = $region36
        $region35: #{tpu_custom_call.1} parent=31 // pred_region
          %153 = dma.done [#allocation3], 4096
        $region36: #{tpu_custom_call.1} parent=31 // pred_fallthru
          _
        %p154 = pneg %p32
        %p155 = pneg %p29
        %p156 = pneg %p53
        %p157 = pneg %p50
        %p158 = scmp.lt.s32.totalorder %s16, 1
        %s159 = scalar_select %p158, %s16, 1
        %s160 = smul.addr %s159, 2
        %s161 = smul.addr %s160, 8
        %s162 = scalar_lea.vmem %s2, %s161
        %p163 = pneg %p79
        %p164 = pneg %p76
        %p165 = pneg %p100
        %p166 = pneg %p97
        %p167 = scmp.lt.s32.totalorder %s16, 1
        %s168 = scalar_select %p167, %s16, 1
        %s169 = smul.addr %s168, 2
        %s170 = smul.addr %s169, 8
        %s171 = scalar_lea.vmem %s2, %s170
        %p173 = scmp.eq.s32.totalorder %s16, 0
        // Predicated region
        $region37: #{tpu_custom_call.1} parent=31 // pred_check
          %p174 = pneg %p173
        $region38: #{tpu_custom_call.1} parent=31 // pred_check_branch
          %176 = sbr.rel (%p174) target = $region40
        $region39: #{tpu_custom_call.1} parent=31 // pred_region
          %v177 = vlaneseq
          %v178 = vand.u32 %v177, 127
          %v179 = vld [vmem:[%s0] sm:$0xff]
          %v180 = vld [vmem:[%s0 + $0x8] sm:$0xff]
          %181 = vset.pattern.permute.xlu0 0
          %182 = vperm.xlu0 %181, %v179
          %v183 = vpop.permute.xlu0 %182
          %184 = vset.pattern.permute.xlu0 0
          %185 = vperm.xlu0 %184, %v180
          %v186 = vpop.permute.xlu0 %185
          %vm187 = vcmp.eq.s32.totalorder %v178, %v183
          %vm188 = vcmp.eq.s32.totalorder %v178, %v186
          %v189 = vsel %vm187, 1, 0
          %v190 = vsel %vm188, 1, 0
          %v191 = vcvt.s32.f32 %v189
          %v192 = vcvt.s32.f32 %v190
          %193 = vst [vmem:[#allocation5] sm:$0xff] %v191
          %194 = vst [vmem:[#allocation5 + $0x8] sm:$0xff] %v192
        $region40: #{tpu_custom_call.1} parent=31 // pred_fallthru
          _
        %v195 = vld [vmem:[#allocation5] sm:$0xff]
        %v196 = vld [vmem:[#allocation5 + $0x8] sm:$0xff]
        %v197 = vld [vmem:[%s171] sm:$0xff]
        %v198 = vld [vmem:[%s171 + $0x8] sm:$0xff]
        %v199 = vpack.c.bf16 %v196, %v195
        %v200 = vld [vmem:[#allocation2] sm:$0xff]
        %v201 = vld [vmem:[#allocation2 + $0x8] sm:$0xff]
        %v202 = vld [vmem:[#allocation2 + $0x10] sm:$0xff]
        %v203 = vld [vmem:[#allocation2 + $0x18] sm:$0xff]
        %v204 = vld [vmem:[#allocation2 + $0x20] sm:$0xff]
        %v205 = vld [vmem:[#allocation2 + $0x28] sm:$0xff]
        %v206 = vld [vmem:[#allocation2 + $0x30] sm:$0xff]
        %v207 = vld [vmem:[#allocation2 + $0x38] sm:$0xff]
        %v208 = vld [vmem:[#allocation2 + $0x40] sm:$0xff]
        %v209 = vld [vmem:[#allocation2 + $0x48] sm:$0xff]
        %v210 = vld [vmem:[#allocation2 + $0x50] sm:$0xff]
        %v211 = vld [vmem:[#allocation2 + $0x58] sm:$0xff]
        %v212 = vld [vmem:[#allocation2 + $0x60] sm:$0xff]
        %v213 = vld [vmem:[#allocation2 + $0x68] sm:$0xff]
        %v214 = vld [vmem:[#allocation2 + $0x70] sm:$0xff]
        %v215 = vld [vmem:[#allocation2 + $0x78] sm:$0xff]
        %v216 = vld [vmem:[#allocation2 + $0x80] sm:$0xff]
        %v217 = vld [vmem:[#allocation2 + $0x88] sm:$0xff]
        %v218 = vld [vmem:[#allocation2 + $0x90] sm:$0xff]
        %v219 = vld [vmem:[#allocation2 + $0x98] sm:$0xff]
        %v220 = vld [vmem:[#allocation2 + $0xa0] sm:$0xff]
        %v221 = vld [vmem:[#allocation2 + $0xa8] sm:$0xff]
        %v222 = vld [vmem:[#allocation2 + $0xb0] sm:$0xff]
        %v223 = vld [vmem:[#allocation2 + $0xb8] sm:$0xff]
        %v224 = vld [vmem:[#allocation2 + $0xc0] sm:$0xff]
        %v225 = vld [vmem:[#allocation2 + $0xc8] sm:$0xff]
        %v226 = vld [vmem:[#allocation2 + $0xd0] sm:$0xff]
        %v227 = vld [vmem:[#allocation2 + $0xd8] sm:$0xff]
        %v228 = vld [vmem:[#allocation2 + $0xe0] sm:$0xff]
        %v229 = vld [vmem:[#allocation2 + $0xe8] sm:$0xff]
        %v230 = vld [vmem:[#allocation2 + $0xf0] sm:$0xff]
        %v231 = vld [vmem:[#allocation2 + $0xf8] sm:$0xff]
        %v264 = vunpack.c.l.b16 %v200
        %v265 = vunpack.c.h.b16 %v200
        %v266 = vunpack.c.l.b16 %v201
        %v267 = vunpack.c.h.b16 %v201
        %v268 = vunpack.c.l.b16 %v202
        %v269 = vunpack.c.h.b16 %v202
        %v270 = vunpack.c.l.b16 %v203
        %v271 = vunpack.c.h.b16 %v203
        %v272 = vunpack.c.l.b16 %v204
        %v273 = vunpack.c.h.b16 %v204
        %v274 = vunpack.c.l.b16 %v205
        %v275 = vunpack.c.h.b16 %v205
        %v276 = vunpack.c.l.b16 %v206
        %v277 = vunpack.c.h.b16 %v206
        %v278 = vunpack.c.l.b16 %v207
        %v279 = vunpack.c.h.b16 %v207
        %v280 = vunpack.c.l.b16 %v208
        %v281 = vunpack.c.h.b16 %v208
        %v282 = vunpack.c.l.b16 %v209
        %v283 = vunpack.c.h.b16 %v209
        %v284 = vunpack.c.l.b16 %v210
        %v285 = vunpack.c.h.b16 %v210
        %v286 = vunpack.c.l.b16 %v211
        %v287 = vunpack.c.h.b16 %v211
        %v288 = vunpack.c.l.b16 %v212
        %v289 = vunpack.c.h.b16 %v212
        %v290 = vunpack.c.l.b16 %v213
        %v291 = vunpack.c.h.b16 %v213
        %v292 = vunpack.c.l.b16 %v214
        %v293 = vunpack.c.h.b16 %v214
        %v294 = vunpack.c.l.b16 %v215
        %v295 = vunpack.c.h.b16 %v215
        %v296 = vunpack.c.l.b16 %v216
        %v297 = vunpack.c.h.b16 %v216
        %v298 = vunpack.c.l.b16 %v217
        %v299 = vunpack.c.h.b16 %v217
        %v300 = vunpack.c.l.b16 %v218
        %v301 = vunpack.c.h.b16 %v218
        %v302 = vunpack.c.l.b16 %v219
        %v303 = vunpack.c.h.b16 %v219
        %v304 = vunpack.c.l.b16 %v220
        %v305 = vunpack.c.h.b16 %v220
        %v306 = vunpack.c.l.b16 %v221
        %v307 = vunpack.c.h.b16 %v221
        %v308 = vunpack.c.l.b16 %v222
        %v309 = vunpack.c.h.b16 %v222
        %v310 = vunpack.c.l.b16 %v223
        %v311 = vunpack.c.h.b16 %v223
        %v312 = vunpack.c.l.b16 %v224
        %v313 = vunpack.c.h.b16 %v224
        %v314 = vunpack.c.l.b16 %v225
        %v315 = vunpack.c.h.b16 %v225
        %v316 = vunpack.c.l.b16 %v226
        %v317 = vunpack.c.h.b16 %v226
        %v318 = vunpack.c.l.b16 %v227
        %v319 = vunpack.c.h.b16 %v227
        %v320 = vunpack.c.l.b16 %v228
        %v321 = vunpack.c.h.b16 %v228
        %v322 = vunpack.c.l.b16 %v229
        %v323 = vunpack.c.h.b16 %v229
        %v324 = vunpack.c.l.b16 %v230
        %v325 = vunpack.c.h.b16 %v230
        %v326 = vunpack.c.l.b16 %v231
        %v327 = vunpack.c.h.b16 %v231
        %v328 = vpack.c.b16 %v268, %v264
        %v329 = vpack.c.b16 %v269, %v265
        %v330 = vpack.c.b16 %v270, %v266
        %v331 = vpack.c.b16 %v271, %v267
        %v332 = vpack.c.b16 %v276, %v272
        %v333 = vpack.c.b16 %v277, %v273
        %v334 = vpack.c.b16 %v278, %v274
        %v335 = vpack.c.b16 %v279, %v275
        %v336 = vpack.c.b16 %v284, %v280
        %v337 = vpack.c.b16 %v285, %v281
        %v338 = vpack.c.b16 %v286, %v282
        %v339 = vpack.c.b16 %v287, %v283
        %v340 = vpack.c.b16 %v292, %v288
        %v341 = vpack.c.b16 %v293, %v289
        %v342 = vpack.c.b16 %v294, %v290
        %v343 = vpack.c.b16 %v295, %v291
        %v344 = vpack.c.b16 %v300, %v296
        %v345 = vpack.c.b16 %v301, %v297
        %v346 = vpack.c.b16 %v302, %v298
        %v347 = vpack.c.b16 %v303, %v299
        %v348 = vpack.c.b16 %v308, %v304
        %v349 = vpack.c.b16 %v309, %v305
        %v350 = vpack.c.b16 %v310, %v306
        %v351 = vpack.c.b16 %v311, %v307
        %v352 = vpack.c.b16 %v316, %v312
        %v353 = vpack.c.b16 %v317, %v313
        %v354 = vpack.c.b16 %v318, %v314
        %v355 = vpack.c.b16 %v319, %v315
        %v356 = vpack.c.b16 %v324, %v320
        %v357 = vpack.c.b16 %v325, %v321
        %v358 = vpack.c.b16 %v326, %v322
        %v359 = vpack.c.b16 %v327, %v323
        %392 = vmatprep.subr.bf16.mxu0 %v329
        %393 = vmatpush1.bf16.msra.mxu0 %v328
        %394 = vmatprep.subr.bf16.mxu0 %v333
        %395 = vmatpush1.bf16.msra.mxu0 %v332
        %396 = vmatprep.subr.bf16.mxu0 %v337
        %397 = vmatpush1.bf16.msra.mxu0 %v336
        %398 = vmatprep.subr.bf16.mxu0 %v341
        %399 = vmatpush1.bf16.msra.mxu0 %v340
        %400 = vmatprep.subr.bf16.mxu0 %v345
        %401 = vmatpush1.bf16.msra.mxu0 %v344
        %402 = vmatprep.subr.bf16.mxu0 %v349
        %403 = vmatpush1.bf16.msra.mxu0 %v348
        %404 = vmatprep.subr.bf16.mxu0 %v353
        %405 = vmatpush1.bf16.msra.mxu0 %v352
        %406 = vmatprep.subr.bf16.mxu0 %v357
        %407 = vmatpush1.bf16.msra.mxu0 %v356
        %408 = vmatprep.subr.bf16.mxu0 0
        %409 = vmatpush1.bf16.msra.mxu0 0
        %410 = vmatprep.subr.bf16.mxu0 0
        %411 = vmatpush1.bf16.msra.mxu0 0
        %412 = vmatprep.subr.bf16.mxu0 0
        %413 = vmatpush1.bf16.msra.mxu0 0
        %414 = vmatprep.subr.bf16.mxu0 0
        %415 = vmatpush1.bf16.msra.mxu0 0
        %416 = vmatprep.subr.bf16.mxu0 0
        %417 = vmatpush1.bf16.msra.mxu0 0
        %418 = vmatprep.subr.bf16.mxu0 0
        %419 = vmatpush1.bf16.msra.mxu0 0
        %420 = vmatprep.subr.bf16.mxu0 0
        %421 = vmatpush1.bf16.msra.mxu0 0
        %422 = vmatprep.subr.bf16.mxu0 0
        %423 = vmatpush1.bf16.msra.mxu0 0
        %424 = vmatprep.mubr.bf16.mxu0 0
        %425 = vmatmul.mubr.bf16.gmra.mrb[0].mxu0 %v199
        %v426 = vpop.f32.mrb[0].mxu0
        %v427 = vadd.f32 0.0, %v426
        %v428 = vpop.f32.mrb[0].mxu0
        %v429 = vadd.f32 0.0, %v428
        %v430 = vpop.f32.mrb[0].mxu0
        %v431 = vadd.f32 0.0, %v430
        %v432 = vpop.f32.mrb[0].mxu0
        %v433 = vadd.f32 0.0, %v432
        %434 = vdwg.mxu0
        %435 = vmatprep.subr.bf16.mxu0 %v331
        %436 = vmatpush1.bf16.msra.mxu0 %v330
        %437 = vmatprep.subr.bf16.mxu0 %v335
        %438 = vmatpush1.bf16.msra.mxu0 %v334
        %439 = vmatprep.subr.bf16.mxu0 %v339
        %440 = vmatpush1.bf16.msra.mxu0 %v338
        %441 = vmatprep.subr.bf16.mxu0 %v343
        %442 = vmatpush1.bf16.msra.mxu0 %v342
        %443 = vmatprep.subr.bf16.mxu0 %v347
        %444 = vmatpush1.bf16.msra.mxu0 %v346
        %445 = vmatprep.subr.bf16.mxu0 %v351
        %446 = vmatpush1.bf16.msra.mxu0 %v350
        %447 = vmatprep.subr.bf16.mxu0 %v355
        %448 = vmatpush1.bf16.msra.mxu0 %v354
        %449 = vmatprep.subr.bf16.mxu0 %v359
        %450 = vmatpush1.bf16.msra.mxu0 %v358
        %451 = vmatprep.subr.bf16.mxu0 0
        %452 = vmatpush1.bf16.msra.mxu0 0
        %453 = vmatprep.subr.bf16.mxu0 0
        %454 = vmatpush1.bf16.msra.mxu0 0
        %455 = vmatprep.subr.bf16.mxu0 0
        %456 = vmatpush1.bf16.msra.mxu0 0
        %457 = vmatprep.subr.bf16.mxu0 0
        %458 = vmatpush1.bf16.msra.mxu0 0
        %459 = vmatprep.subr.bf16.mxu0 0
        %460 = vmatpush1.bf16.msra.mxu0 0
        %461 = vmatprep.subr.bf16.mxu0 0
        %462 = vmatpush1.bf16.msra.mxu0 0
        %463 = vmatprep.subr.bf16.mxu0 0
        %464 = vmatpush1.bf16.msra.mxu0 0
        %465 = vmatprep.subr.bf16.mxu0 0
        %466 = vmatpush1.bf16.msra.mxu0 0
        %467 = vmatprep.mubr.bf16.mxu0 0
        %468 = vmatmul.mubr.bf16.gmra.mrb[0].mxu0 %v199
        %v469 = vpop.f32.mrb[0].mxu0
        %v470 = vadd.f32 0.0, %v469
        %v471 = vpop.f32.mrb[0].mxu0
        %v472 = vadd.f32 0.0, %v471
        %v473 = vpop.f32.mrb[0].mxu0
        %v474 = vadd.f32 0.0, %v473
        %v475 = vpop.f32.mrb[0].mxu0
        %v476 = vadd.f32 0.0, %v475
        %477 = vdwg.mxu0
        %479 = vset.pattern.permute.xlu0 4
        %480 = vperm.xlu0 %479, %v197
        %v481 = vpop.permute.xlu0 %480
        %484 = vset.pattern.permute.xlu0 4
        %485 = vperm.xlu0 %484, %v198
        %v486 = vpop.permute.xlu0 %485
        %v488 = vmul.f32 %v195, %v481
        %v489 = vmul.f32 %v196, %v486
        %490 = vset.pattern.permute.xlu0 0
        %491 = vperm.xlu0 %490, %v197
        %v492 = vpop.permute.xlu0 %491
        %494 = vset.pattern.permute.xlu0 0
        %495 = vperm.xlu0 %494, %v198
        %v496 = vpop.permute.xlu0 %495
        %v498 = vmul.f32 %v427, %v492
        %v499 = vmul.f32 %v431, %v496
        %v500 = vadd.f32 %v488, %v498
        %v501 = vadd.f32 %v489, %v499
        %502 = vset.pattern.permute.xlu0 1
        %503 = vperm.xlu0 %502, %v197
        %v504 = vpop.permute.xlu0 %503
        %506 = vset.pattern.permute.xlu0 1
        %507 = vperm.xlu0 %506, %v198
        %v508 = vpop.permute.xlu0 %507
        %v510 = vmul.f32 %v429, %v504
        %v511 = vmul.f32 %v433, %v508
        %v512 = vadd.f32 %v500, %v510
        %v513 = vadd.f32 %v501, %v511
        %514 = vset.pattern.permute.xlu0 2
        %515 = vperm.xlu0 %514, %v197
        %v516 = vpop.permute.xlu0 %515
        %518 = vset.pattern.permute.xlu0 2
        %519 = vperm.xlu0 %518, %v198
        %v520 = vpop.permute.xlu0 %519
        %v522 = vmul.f32 %v470, %v516
        %v523 = vmul.f32 %v474, %v520
        %v524 = vadd.f32 %v512, %v522
        %v525 = vadd.f32 %v513, %v523
        %526 = vset.pattern.permute.xlu0 3
        %527 = vperm.xlu0 %526, %v197
        %v528 = vpop.permute.xlu0 %527
        %530 = vset.pattern.permute.xlu0 3
        %531 = vperm.xlu0 %530, %v198
        %v532 = vpop.permute.xlu0 %531
        %v534 = vmul.f32 %v472, %v528
        %v535 = vmul.f32 %v476, %v532
        %v536 = vadd.f32 %v524, %v534
        %v537 = vadd.f32 %v525, %v535
        %v538 = vand.u32 2147483647, %v536
        %v539 = vand.u32 2147483647, %v537
        %540 = vadd.xlane.f32.xlu0 %v538
        %v541 = vpop.xlane.xlu0 %540
        %542 = vadd.xlane.f32.xlu0 %v539
        %v543 = vpop.xlane.xlu0 %542
        %v544 = vmax.f32 %v541, 1e-06
        %v545 = vmax.f32 %v543, 1e-06
        %v546 = vrcp.pop %v544
        %v547 = vmul.f32 %v536, %v546
        %v548 = vrcp.pop %v545
        %v549 = vmul.f32 %v537, %v548
        %550 = vst [vmem:[#allocation5] sm:$0xff] %v547
        %551 = vst [vmem:[#allocation5 + $0x8] sm:$0xff] %v549
        // Predicated region
        $region41: #{tpu_custom_call.1} parent=31 // pred_check
          %p552 = pneg %p97
        $region42: #{tpu_custom_call.1} parent=31 // pred_check_branch
          %554 = sbr.rel (%p552) target = $region44
        $region43: #{tpu_custom_call.1} parent=31 // pred_region
          %s556 = ssub.s32 256, 256
          %557 = vsyncadd [#allocation4], %s556
          %s558 = sshll.u32 [#allocation5], 4
          %s559 = int_to_ptr.vmem [resolvable:$true] %s558
          %564 = dma.vmem_to_hbm [thread:$0]  %s559, 256, %s3, [#allocation4], 128, 128, 8
        $region44: #{tpu_custom_call.1} parent=31 // pred_fallthru
          _
        // Predicated region
        $region45: #{tpu_custom_call.1} parent=31 // pred_check
          %p565 = pneg %p97
        $region46: #{tpu_custom_call.1} parent=31 // pred_check_branch
          %567 = sbr.rel (%p565) target = $region48
        $region47: #{tpu_custom_call.1} parent=31 // pred_region
          %568 = dma.done [#allocation4], 256
        $region48: #{tpu_custom_call.1} parent=31 // pred_fallthru
          _
      $region32: #{tpu_custom_call.1} parent=5 // pred_fallthru
        _
      %p569 = scmp.le.s32.totalorder 2, %s11
      // Predicated region
      $region49: #{tpu_custom_call.1} parent=5 // pred_check
        %p570 = pneg %p569
      $region50: #{tpu_custom_call.1} parent=5 // pred_check_branch
        %572 = sbr.rel (%p570) target = $region52
      $region51: #{tpu_custom_call.1} parent=5 // pred_region
        %s573 = ssub.s32 %s11, 2
      $region52: #{tpu_custom_call.1} parent=5 // pred_fallthru
        _
    $region6: #{tpu_custom_call.1} parent=1 // loop_footer
      %s15 = sadd.s32 1, %s11
    $region7: #{tpu_custom_call.1} parent=1 // loop_footer_branch
      %10 = sbr.rel target = $region3
    $region8: #{tpu_custom_call.1} parent=1 // loop_exit
      _
    %574 = vsyncpa [#allocation3], 1
    %s575 = scalar_lea.sflag [#allocation3], 1
    %576 = vsyncpa %s575, 1
    %577 = vsyncpa [#allocation4], 1
    %s578 = scalar_lea.sflag [#allocation4], 1
    %579 = vsyncpa %s578, 1

</llo_original>
